<compile_context>
chip_gen: v6e
topology: v6e:2x2x1
jax: 0.10.0
libtpu: 0.0.40
codegen_flags: <defaults>
</compile_context>

<pallas_src>
import jax
import jax.numpy as jnp
from jax.experimental import pallas as pl
from jax.experimental.pallas import tpu as pltpu

# ----------------------------- model sizes ---------------------------------
OBS_C, OBS_H, OBS_W = 4, 16, 16          # observation planes (C, H, W)
D_IN = OBS_C * OBS_H * OBS_W             # 1024
HIDDEN = 64
NUM_ACTIONS = 8
OUT_PAD = 128                            # lane-dense padded logits width
TM_MAX = 512                             # batch-tile rows (v7x-safe VMEM budget)


# ------------------------------ Pallas kernel ------------------------------
def _policy_mlp_kernel(x_ref, w1_ref, b1_ref, w2_ref, b2_ref, w3_ref, b3_ref,
                       out_ref):
    """Fused 3-layer MLP on one batch tile.

    logits_pad = relu(relu(x@W1+b1)@W2+b2)@W3p + b3p     (W3p/b3p lane-padded)
    bf16 matmul operands, f32 accumulation / biases / output.
    """
    # Hoist bias loads/broadcasts once (insurance if body is ever sub-tiled).
    b1 = b1_ref[...]
    b2 = b2_ref[...]
    b3 = b3_ref[...]

    x = x_ref[...].astype(jnp.bfloat16)                              # [TM, D_IN]
    h1 = jnp.dot(x, w1_ref[...], preferred_element_type=jnp.float32)
    h1 = jnp.maximum(h1 + b1, 0.0).astype(jnp.bfloat16)              # [TM, HIDDEN]
    h2 = jnp.dot(h1, w2_ref[...], preferred_element_type=jnp.float32)
    h2 = jnp.maximum(h2 + b2, 0.0).astype(jnp.bfloat16)              # [TM, HIDDEN]
    logits = jnp.dot(h2, w3_ref[...], preferred_element_type=jnp.float32)
    out_ref[...] = logits + b3                                       # [TM, OUT_PAD]


# ------------------------------ host wrapper --------------------------------
def policy_net_forward(x_flat, params):
    """x_flat: [B, D_IN] float32 -> logits [B, NUM_ACTIONS] float32."""
    w1, b1, w2, b2, w3p, b3p = params
    B = x_flat.shape[0]

    # Round batch up to sublane multiple (8); tile the batch axis.
    padded_b = max(8, ((B + 7) // 8) * 8)
    tm = min(TM_MAX, padded_b)
    padded_b = ((padded_b + tm - 1) // tm) * tm
    if padded_b != B:
        x_flat = jnp.pad(x_flat, ((0, padded_b - B), (0, 0)))
    grid = (pl.cdiv(padded_b, tm),)

    flops = 2 * padded_b * (D_IN * HIDDEN + HIDDEN * HIDDEN + HIDDEN * OUT_PAD)
    bytes_accessed = (
        padded_b * D_IN * 4                      # x (f32)
        + (w1.size + w2.size + w3p.size) * 2     # weights (bf16)
        + (b1.size + b2.size + b3p.size) * 4     # biases (f32)
        + padded_b * OUT_PAD * 4                 # padded logits out (f32)
    )

    out = pl.pallas_call(
        _policy_mlp_kernel,
        out_shape=jax.ShapeDtypeStruct((padded_b, OUT_PAD), jnp.float32),
        grid=grid,
        in_specs=[
            pl.BlockSpec((tm, D_IN), lambda i: (i, 0)),          # x tile (pipelined)
            pl.BlockSpec((D_IN, HIDDEN), lambda i: (0, 0)),      # W1 (resident)
            pl.BlockSpec((1, HIDDEN), lambda i: (0, 0)),         # b1
            pl.BlockSpec((HIDDEN, HIDDEN), lambda i: (0, 0)),    # W2
            pl.BlockSpec((1, HIDDEN), lambda i: (0, 0)),         # b2
            pl.BlockSpec((HIDDEN, OUT_PAD), lambda i: (0, 0)),   # W3 (lane-padded)
            pl.BlockSpec((1, OUT_PAD), lambda i: (0, 0)),        # b3 (lane-padded)
        ],
        out_specs=pl.BlockSpec((tm, OUT_PAD), lambda i: (i, 0)),
        compiler_params=pltpu.CompilerParams(
            dimension_semantics=("parallel",),
            vmem_limit_bytes=32 * 1024 * 1024,
        ),
        cost_estimate=pl.CostEstimate(
            flops=flops, transcendentals=0, bytes_accessed=bytes_accessed),
    )(x_flat, w1, b1, w2, b2, w3p, b3p)

    return out[:B, :NUM_ACTIONS]


def batched_policy_wrapper_forward(observation, params):
    """Pallas equivalent of BatchedPolicyWrapper.forward."""
    if observation.ndim == 3:                      # matches `observation.dim() == 3`
        observation = observation[None]            # unsqueeze(0)
    B = observation.shape[0]
    x_flat = observation.reshape(B, -1).astype(jnp.float32)   # NCHW row-major flatten
    return policy_net_forward(x_flat, params)


# --------------------------- deterministic init -----------------------------
def init_params(key):
    k1, k2, k3 = jax.random.split(key, 3)
    # Kaiming-ish scaled normals; weights stored bf16 (MXU-native), biases f32.
    w1 = (jax.random.normal(k1, (D_IN, HIDDEN), jnp.float32)
          / jnp.sqrt(D_IN)).astype(jnp.bfloat16)
    b1 = jnp.zeros((1, HIDDEN), jnp.float32)
    w2 = (jax.random.normal(k2, (HIDDEN, HIDDEN), jnp.float32)
          / jnp.sqrt(HIDDEN)).astype(jnp.bfloat16)
    b2 = jnp.zeros((1, HIDDEN), jnp.float32)
    w3 = (jax.random.normal(k3, (HIDDEN, NUM_ACTIONS), jnp.float32)
          / jnp.sqrt(HIDDEN)).astype(jnp.bfloat16)
    b3 = jnp.zeros((1, NUM_ACTIONS), jnp.float32)
    # Lane-pad the output head to 128 so the kernel store is lane-dense.
    w3p = jnp.zeros((HIDDEN, OUT_PAD), jnp.bfloat16).at[:, :NUM_ACTIONS].set(w3)
    b3p = jnp.zeros((1, OUT_PAD), jnp.float32).at[:, :NUM_ACTIONS].set(b3)
    return (w1, b1, w2, b2, w3p, b3p)


# --------------------------------- main -------------------------------------
if __name__ == "__main__":
    key = jax.random.PRNGKey(0)
    pkey, okey = jax.random.split(key)
    params = init_params(pkey)

    # Batched observation, NCHW: [B=2, C=4, H=16, W=16]
    obs_batched = jax.random.normal(okey, (2, OBS_C, OBS_H, OBS_W), jnp.float32)
    logits_b = batched_policy_wrapper_forward(obs_batched, params)
    jax.block_until_ready(logits_b)
    assert logits_b.shape == (2, NUM_ACTIONS)

    # Unbatched 3-D observation exercises the unsqueeze(0) path.
    obs_single = obs_batched[0]                          # [C, H, W]
    logits_s = batched_policy_wrapper_forward(obs_single, params)
    jax.block_until_ready(logits_s)
    assert logits_s.shape == (1, NUM_ACTIONS)

    # Cross-check the Pallas kernel against a pure-JAX reference that mirrors
    # the bf16-operand / f32-accumulation arithmetic.
    def ref(obs):
        if obs.ndim == 3:
            obs = obs[None]
        x = obs.reshape(obs.shape[0], -1).astype(jnp.float32)
        w1, b1, w2, b2, w3p, b3p = params
        w1f, w2f, w3f = (w.astype(jnp.float32) for w in (w1, w2, w3p))
        xb = x.astype(jnp.bfloat16).astype(jnp.float32)
        h1 = jnp.maximum(xb @ w1f + b1, 0.0)
        h1b = h1.astype(jnp.bfloat16).astype(jnp.float32)
        h2 = jnp.maximum(h1b @ w2f + b2, 0.0)
        h2b = h2.astype(jnp.bfloat16).astype(jnp.float32)
        return (h2b @ w3f + b3p)[:, :NUM_ACTIONS]

    assert jnp.allclose(logits_b, ref(obs_batched), atol=1e-2, rtol=1e-2)
    assert jnp.allclose(logits_s, ref(obs_single), atol=1e-2, rtol=1e-2)

    print("KERNEL_OK")
</pallas_src>

<mosaic_0001>
module attributes {stable_mosaic.version = 11 : i64} {
  func.func @_policy_mlp_kernel(%arg0: i32, %arg1: memref<8x1024xf32, #tpu.memory_space<vmem>>, %arg2: memref<1024x64xbf16, #tpu.memory_space<vmem>>, %arg3: memref<1x64xf32, #tpu.memory_space<vmem>>, %arg4: memref<64x64xbf16, #tpu.memory_space<vmem>>, %arg5: memref<1x64xf32, #tpu.memory_space<vmem>>, %arg6: memref<64x128xbf16, #tpu.memory_space<vmem>>, %arg7: memref<1x128xf32, #tpu.memory_space<vmem>>, %arg8: memref<8x128xf32, #tpu.memory_space<vmem>>) attributes {dimension_semantics = [#tpu.dimension_semantics<parallel>], iteration_bounds = array<i64: 1>, scalar_prefetch = 0 : i64, scratch_operands = 0 : i64, tpu.core_type = #tpu.core_type<tc>, window_params = [{transform_indices = @transform_0, window_bounds = array<i64: 8, 1024>}, {pipeline_mode = #tpu.pipeline_mode<synchronous>, transform_indices = @transform_1, window_bounds = array<i64: 1024, 64>}, {pipeline_mode = #tpu.pipeline_mode<synchronous>, transform_indices = @transform_2, window_bounds = array<i64: 1, 64>}, {pipeline_mode = #tpu.pipeline_mode<synchronous>, transform_indices = @transform_3, window_bounds = array<i64: 64, 64>}, {pipeline_mode = #tpu.pipeline_mode<synchronous>, transform_indices = @transform_4, window_bounds = array<i64: 1, 64>}, {pipeline_mode = #tpu.pipeline_mode<synchronous>, transform_indices = @transform_5, window_bounds = array<i64: 64, 128>}, {pipeline_mode = #tpu.pipeline_mode<synchronous>, transform_indices = @transform_6, window_bounds = array<i64: 1, 128>}, {transform_indices = @transform_7, window_bounds = array<i64: 8, 128>}]} {
    %c0 = arith.constant 0 : index
    %c0_0 = arith.constant 0 : index
    %0 = vector.load %arg3[%c0, %c0_0] : memref<1x64xf32, #tpu.memory_space<vmem>>, vector<1x64xf32>
    %c0_1 = arith.constant 0 : index
    %c0_2 = arith.constant 0 : index
    %1 = vector.load %arg5[%c0_1, %c0_2] : memref<1x64xf32, #tpu.memory_space<vmem>>, vector<1x64xf32>
    %c0_3 = arith.constant 0 : index
    %c0_4 = arith.constant 0 : index
    %2 = vector.load %arg7[%c0_3, %c0_4] : memref<1x128xf32, #tpu.memory_space<vmem>>, vector<1x128xf32>
    %c0_5 = arith.constant 0 : index
    %c0_6 = arith.constant 0 : index
    %3 = vector.load %arg1[%c0_5, %c0_6] : memref<8x1024xf32, #tpu.memory_space<vmem>>, vector<8x1024xf32>
    %4 = arith.truncf %3 : vector<8x1024xf32> to vector<8x1024xbf16>
    %c0_7 = arith.constant 0 : index
    %c0_8 = arith.constant 0 : index
    %5 = vector.load %arg2[%c0_7, %c0_8] : memref<1024x64xbf16, #tpu.memory_space<vmem>>, vector<1024x64xbf16>
    %cst = arith.constant dense<0.000000e+00> : vector<8x64xf32>
    %6 = tpu.matmul %4, %5, %cst {dimension_numbers = #tpu.dot_dimension_numbers<[1], [0], [0], [1], [0, 0, 1, 1], [], []>} : vector<8x1024xbf16>, vector<1024x64xbf16>, vector<8x64xf32> -> vector<8x64xf32>
    %7 = vector.broadcast %0 : vector<1x64xf32> to vector<8x64xf32>
    %8 = arith.addf %6, %7 : vector<8x64xf32>
    %cst_9 = arith.constant 0.000000e+00 : f32
    %9 = vector.broadcast %cst_9 : f32 to vector<8x64xf32>
    %10 = arith.maximumf %8, %9 : vector<8x64xf32>
    %11 = arith.truncf %10 : vector<8x64xf32> to vector<8x64xbf16>
    %c0_10 = arith.constant 0 : index
    %c0_11 = arith.constant 0 : index
    %12 = vector.load %arg4[%c0_10, %c0_11] : memref<64x64xbf16, #tpu.memory_space<vmem>>, vector<64x64xbf16>
    %cst_12 = arith.constant dense<0.000000e+00> : vector<8x64xf32>
    %13 = tpu.matmul %11, %12, %cst_12 {dimension_numbers = #tpu.dot_dimension_numbers<[1], [0], [0], [1], [0, 0, 1, 1], [], []>} : vector<8x64xbf16>, vector<64x64xbf16>, vector<8x64xf32> -> vector<8x64xf32>
    %14 = vector.broadcast %1 : vector<1x64xf32> to vector<8x64xf32>
    %15 = arith.addf %13, %14 : vector<8x64xf32>
    %cst_13 = arith.constant 0.000000e+00 : f32
    %16 = vector.broadcast %cst_13 : f32 to vector<8x64xf32>
    %17 = arith.maximumf %15, %16 : vector<8x64xf32>
    %18 = arith.truncf %17 : vector<8x64xf32> to vector<8x64xbf16>
    %c0_14 = arith.constant 0 : index
    %c0_15 = arith.constant 0 : index
    %19 = vector.load %arg6[%c0_14, %c0_15] : memref<64x128xbf16, #tpu.memory_space<vmem>>, vector<64x128xbf16>
    %cst_16 = arith.constant dense<0.000000e+00> : vector<8x128xf32>
    %20 = tpu.matmul %18, %19, %cst_16 {dimension_numbers = #tpu.dot_dimension_numbers<[1], [0], [0], [1], [0, 0, 1, 1], [], []>} : vector<8x64xbf16>, vector<64x128xbf16>, vector<8x128xf32> -> vector<8x128xf32>
    %21 = vector.broadcast %2 : vector<1x128xf32> to vector<8x128xf32>
    %22 = arith.addf %20, %21 : vector<8x128xf32>
    %c0_17 = arith.constant 0 : index
    %c0_18 = arith.constant 0 : index
    %23 = vector.load %arg8[%c0_17, %c0_18] : memref<8x128xf32, #tpu.memory_space<vmem>>, vector<8x128xf32>
    tpu.vector_store %arg8[%c0_17, %c0_18], %22 {strides = array<i32>} : memref<8x128xf32, #tpu.memory_space<vmem>>, vector<8x128xf32>,
    return
  }
  func.func @transform_0(%arg0: i32) -> (i32, i32) {
    %c0_i32 = arith.constant 0 : i32
    %c0_i32_0 = arith.constant 0 : i32
    return %arg0, %c0_i32 : i32, i32
  }
  func.func @transform_1(%arg0: i32) -> (i32, i32) {
    %c0_i32 = arith.constant 0 : i32
    %c0_i32_0 = arith.constant 0 : i32
    %c0_i32_1 = arith.constant 0 : i32
    return %c0_i32, %c0_i32_0 : i32, i32
  }
  func.func @transform_2(%arg0: i32) -> (i32, i32) {
    %c0_i32 = arith.constant 0 : i32
    %c0_i32_0 = arith.constant 0 : i32
    %c0_i32_1 = arith.constant 0 : i32
    return %c0_i32, %c0_i32_0 : i32, i32
  }
  func.func @transform_3(%arg0: i32) -> (i32, i32) {
    %c0_i32 = arith.constant 0 : i32
    %c0_i32_0 = arith.constant 0 : i32
    %c0_i32_1 = arith.constant 0 : i32
    return %c0_i32, %c0_i32_0 : i32, i32
  }
  func.func @transform_4(%arg0: i32) -> (i32, i32) {
    %c0_i32 = arith.constant 0 : i32
    %c0_i32_0 = arith.constant 0 : i32
    %c0_i32_1 = arith.constant 0 : i32
    return %c0_i32, %c0_i32_0 : i32, i32
  }
  func.func @transform_5(%arg0: i32) -> (i32, i32) {
    %c0_i32 = arith.constant 0 : i32
    %c0_i32_0 = arith.constant 0 : i32
    %c0_i32_1 = arith.constant 0 : i32
    return %c0_i32, %c0_i32_0 : i32, i32
  }
  func.func @transform_6(%arg0: i32) -> (i32, i32) {
    %c0_i32 = arith.constant 0 : i32
    %c0_i32_0 = arith.constant 0 : i32
    %c0_i32_1 = arith.constant 0 : i32
    return %c0_i32, %c0_i32_0 : i32, i32
  }
  func.func @transform_7(%arg0: i32) -> (i32, i32) {
    %c0_i32 = arith.constant 0 : i32
    %c0_i32_0 = arith.constant 0 : i32
    return %arg0, %c0_i32 : i32, i32
  }
}

</mosaic_0001>

<llo_original>
// kernel: tpu_custom_call.1
$region0: #{tpu_custom_call.1}
  #allocation0 [shape = 'u32[]', space=smem, size = 0x4, offset = 0x4, fixed_abs, tag = 'smem constant byte address 0x4 - core index']
  #allocation1 [shape = 'u32[144,128]{1,0:T(1,128)}', space=vmem, size = 0x12000, scoped, tag = 'internal scratch']
  %s0 = inlined_call_operand.vmem [shape: f32[8,1024], index: 0, kind: input, shape index: {}]
  %s1 = inlined_call_operand.vmem [shape: bf16[1024,64], index: 1, kind: input, shape index: {}]
  %s2 = inlined_call_operand.vmem [shape: f32[1,64], index: 2, kind: input, shape index: {}]
  %s3 = inlined_call_operand.vmem [shape: bf16[64,64], index: 3, kind: input, shape index: {}]
  %s4 = inlined_call_operand.vmem [shape: f32[1,64], index: 4, kind: input, shape index: {}]
  %s5 = inlined_call_operand.vmem [shape: bf16[64,128], index: 5, kind: input, shape index: {}]
  %s6 = inlined_call_operand.vmem [shape: f32[1,128], index: 6, kind: input, shape index: {}]
  %s7 = inlined_call_operand.hbm [shape: f32[8,128], index: 7, kind: output, shape index: {}]
  %s8 = sld [smem:[#allocation0]]
  $region38: #{tpu_custom_call.1} parent=0
    _
  %s10 = ssub.s32 1, %s8
  %s11 = scalar_select 0, %s10, %s8
  $region1: #{tpu_custom_call.1} parent=0
    #allocation2 [shape = 'u8[4096]{0}', space=vmem, size = 0x1000, scoped, tag = 'output window, operand 0, single buffered']
    #allocation3 [shape = 's32[1]{0}', space=sflag, size = 0x4, scoped, tag = 'scoped memory for tpu_custom_call.1']
    %12 = vsyncpa [#allocation3], 0
    // Predicated region
    $region2: #{tpu_custom_call.1} parent=1 // pred_check
      _
    $region3: #{tpu_custom_call.1} parent=1 // pred_check_branch
      %14 = sbr.rel (0) target = $region5
    $region4: #{tpu_custom_call.1} parent=1 // pred_region
      _
    $region5: #{tpu_custom_call.1} parent=1 // pred_fallthru
      _
    // Predicated region
    $region6: #{tpu_custom_call.1} parent=1 // pred_check
      _
    $region7: #{tpu_custom_call.1} parent=1 // pred_check_branch
      %16 = sbr.rel (0) target = $region9
    $region8: #{tpu_custom_call.1} parent=1 // pred_region
      _
    $region9: #{tpu_custom_call.1} parent=1 // pred_fallthru
      _
    // Predicated region
    $region10: #{tpu_custom_call.1} parent=1 // pred_check
      _
    $region11: #{tpu_custom_call.1} parent=1 // pred_check_branch
      %18 = sbr.rel (0) target = $region13
    $region12: #{tpu_custom_call.1} parent=1 // pred_region
      _
    $region13: #{tpu_custom_call.1} parent=1 // pred_fallthru
      _
    // Predicated region
    $region14: #{tpu_custom_call.1} parent=1 // pred_check
      _
    $region15: #{tpu_custom_call.1} parent=1 // pred_check_branch
      %20 = sbr.rel (0) target = $region17
    $region16: #{tpu_custom_call.1} parent=1 // pred_region
      _
    $region17: #{tpu_custom_call.1} parent=1 // pred_fallthru
      _
    // Predicated region
    $region18: #{tpu_custom_call.1} parent=1 // pred_check
      _
    $region19: #{tpu_custom_call.1} parent=1 // pred_check_branch
      %22 = sbr.rel (0) target = $region21
    $region20: #{tpu_custom_call.1} parent=1 // pred_region
      _
    $region21: #{tpu_custom_call.1} parent=1 // pred_fallthru
      _
    // Predicated region
    $region22: #{tpu_custom_call.1} parent=1 // pred_check
      _
    $region23: #{tpu_custom_call.1} parent=1 // pred_check_branch
      %24 = sbr.rel (0) target = $region25
    $region24: #{tpu_custom_call.1} parent=1 // pred_region
      _
    $region25: #{tpu_custom_call.1} parent=1 // pred_fallthru
      _
    // Predicated region
    $region26: #{tpu_custom_call.1} parent=1 // pred_check
      _
    $region27: #{tpu_custom_call.1} parent=1 // pred_check_branch
      %26 = sbr.rel (0) target = $region29
    $region28: #{tpu_custom_call.1} parent=1 // pred_region
      _
    $region29: #{tpu_custom_call.1} parent=1 // pred_fallthru
      _
    %v28 = vld [vmem:[%s2] sm:$0x1]
    %v29 = vld [vmem:[%s4] sm:$0x1]
    %v30 = vld [vmem:[%s6] sm:$0x1]
    %v31 = vld [vmem:[%s0] sm:$0xff]
    %v32 = vld [vmem:[%s0 + $0x8] sm:$0xff]
    %v33 = vld [vmem:[%s0 + $0x10] sm:$0xff]
    %v34 = vld [vmem:[%s0 + $0x18] sm:$0xff]
    %v35 = vld [vmem:[%s0 + $0x20] sm:$0xff]
    %v36 = vld [vmem:[%s0 + $0x28] sm:$0xff]
    %v37 = vld [vmem:[%s0 + $0x30] sm:$0xff]
    %v38 = vld [vmem:[%s0 + $0x38] sm:$0xff]
    %v39 = vpack.c.bf16 %v31, %v31
    %v40 = vpack.c.bf16 %v32, %v32
    %v41 = vpack.c.bf16 %v33, %v33
    %v42 = vpack.c.bf16 %v34, %v34
    %v43 = vpack.c.bf16 %v35, %v35
    %v44 = vpack.c.bf16 %v36, %v36
    %v45 = vpack.c.bf16 %v37, %v37
    %v46 = vpack.c.bf16 %v38, %v38
    %v47 = vld [vmem:[%s1] sm:$0xf]
    %v48 = vld [vmem:[%s1 + $0x4] sm:$0xf]
    %v49 = vld [vmem:[%s1 + $0x8] sm:$0xf]
    %v50 = vld [vmem:[%s1 + $0xc] sm:$0xf]
    %v51 = vld [vmem:[%s1 + $0x10] sm:$0xf]
    %v52 = vld [vmem:[%s1 + $0x14] sm:$0xf]
    %v53 = vld [vmem:[%s1 + $0x18] sm:$0xf]
    %v54 = vld [vmem:[%s1 + $0x1c] sm:$0xf]
    %v55 = vld [vmem:[%s1 + $0x20] sm:$0xf]
    %v56 = vld [vmem:[%s1 + $0x24] sm:$0xf]
    %v57 = vld [vmem:[%s1 + $0x28] sm:$0xf]
    %v58 = vld [vmem:[%s1 + $0x2c] sm:$0xf]
    %v59 = vld [vmem:[%s1 + $0x30] sm:$0xf]
    %v60 = vld [vmem:[%s1 + $0x34] sm:$0xf]
    %v61 = vld [vmem:[%s1 + $0x38] sm:$0xf]
    %v62 = vld [vmem:[%s1 + $0x3c] sm:$0xf]
    %v63 = vld [vmem:[%s1 + $0x40] sm:$0xf]
    %v64 = vld [vmem:[%s1 + $0x44] sm:$0xf]
    %v65 = vld [vmem:[%s1 + $0x48] sm:$0xf]
    %v66 = vld [vmem:[%s1 + $0x4c] sm:$0xf]
    %v67 = vld [vmem:[%s1 + $0x50] sm:$0xf]
    %v68 = vld [vmem:[%s1 + $0x54] sm:$0xf]
    %v69 = vld [vmem:[%s1 + $0x58] sm:$0xf]
    %v70 = vld [vmem:[%s1 + $0x5c] sm:$0xf]
    %v71 = vld [vmem:[%s1 + $0x60] sm:$0xf]
    %v72 = vld [vmem:[%s1 + $0x64] sm:$0xf]
    %v73 = vld [vmem:[%s1 + $0x68] sm:$0xf]
    %v74 = vld [vmem:[%s1 + $0x6c] sm:$0xf]
    %v75 = vld [vmem:[%s1 + $0x70] sm:$0xf]
    %v76 = vld [vmem:[%s1 + $0x74] sm:$0xf]
    %v77 = vld [vmem:[%s1 + $0x78] sm:$0xf]
    %v78 = vld [vmem:[%s1 + $0x7c] sm:$0xf]
    %v79 = vld [vmem:[%s1 + $0x80] sm:$0xf]
    %v80 = vld [vmem:[%s1 + $0x84] sm:$0xf]
    %v81 = vld [vmem:[%s1 + $0x88] sm:$0xf]
    %v82 = vld [vmem:[%s1 + $0x8c] sm:$0xf]
    %v83 = vld [vmem:[%s1 + $0x90] sm:$0xf]
    %v84 = vld [vmem:[%s1 + $0x94] sm:$0xf]
    %v85 = vld [vmem:[%s1 + $0x98] sm:$0xf]
    %v86 = vld [vmem:[%s1 + $0x9c] sm:$0xf]
    %v87 = vld [vmem:[%s1 + $0xa0] sm:$0xf]
    %v88 = vld [vmem:[%s1 + $0xa4] sm:$0xf]
    %v89 = vld [vmem:[%s1 + $0xa8] sm:$0xf]
    %v90 = vld [vmem:[%s1 + $0xac] sm:$0xf]
    %v91 = vld [vmem:[%s1 + $0xb0] sm:$0xf]
    %v92 = vld [vmem:[%s1 + $0xb4] sm:$0xf]
    %v93 = vld [vmem:[%s1 + $0xb8] sm:$0xf]
    %v94 = vld [vmem:[%s1 + $0xbc] sm:$0xf]
    %v95 = vld [vmem:[%s1 + $0xc0] sm:$0xf]
    %v96 = vld [vmem:[%s1 + $0xc4] sm:$0xf]
    %v97 = vld [vmem:[%s1 + $0xc8] sm:$0xf]
    %v98 = vld [vmem:[%s1 + $0xcc] sm:$0xf]
    %v99 = vld [vmem:[%s1 + $0xd0] sm:$0xf]
    %v100 = vld [vmem:[%s1 + $0xd4] sm:$0xf]
    %v101 = vld [vmem:[%s1 + $0xd8] sm:$0xf]
    %v102 = vld [vmem:[%s1 + $0xdc] sm:$0xf]
    %v103 = vld [vmem:[%s1 + $0xe0] sm:$0xf]
    %v104 = vld [vmem:[%s1 + $0xe4] sm:$0xf]
    %v105 = vld [vmem:[%s1 + $0xe8] sm:$0xf]
    %v106 = vld [vmem:[%s1 + $0xec] sm:$0xf]
    %v107 = vld [vmem:[%s1 + $0xf0] sm:$0xf]
    %v108 = vld [vmem:[%s1 + $0xf4] sm:$0xf]
    %v109 = vld [vmem:[%s1 + $0xf8] sm:$0xf]
    %v110 = vld [vmem:[%s1 + $0xfc] sm:$0xf]
    %v111 = vld [vmem:[%s1 + $0x100] sm:$0xf]
    %v112 = vld [vmem:[%s1 + $0x104] sm:$0xf]
    %v113 = vld [vmem:[%s1 + $0x108] sm:$0xf]
    %v114 = vld [vmem:[%s1 + $0x10c] sm:$0xf]
    %v115 = vld [vmem:[%s1 + $0x110] sm:$0xf]
    %v116 = vld [vmem:[%s1 + $0x114] sm:$0xf]
    %v117 = vld [vmem:[%s1 + $0x118] sm:$0xf]
    %v118 = vld [vmem:[%s1 + $0x11c] sm:$0xf]
    %v119 = vld [vmem:[%s1 + $0x120] sm:$0xf]
    %v120 = vld [vmem:[%s1 + $0x124] sm:$0xf]
    %v121 = vld [vmem:[%s1 + $0x128] sm:$0xf]
    %v122 = vld [vmem:[%s1 + $0x12c] sm:$0xf]
    %v123 = vld [vmem:[%s1 + $0x130] sm:$0xf]
    %v124 = vld [vmem:[%s1 + $0x134] sm:$0xf]
    %v125 = vld [vmem:[%s1 + $0x138] sm:$0xf]
    %v126 = vld [vmem:[%s1 + $0x13c] sm:$0xf]
    %v127 = vld [vmem:[%s1 + $0x140] sm:$0xf]
    %v128 = vld [vmem:[%s1 + $0x144] sm:$0xf]
    %v129 = vld [vmem:[%s1 + $0x148] sm:$0xf]
    %v130 = vld [vmem:[%s1 + $0x14c] sm:$0xf]
    %v131 = vld [vmem:[%s1 + $0x150] sm:$0xf]
    %v132 = vld [vmem:[%s1 + $0x154] sm:$0xf]
    %v133 = vld [vmem:[%s1 + $0x158] sm:$0xf]
    %v134 = vld [vmem:[%s1 + $0x15c] sm:$0xf]
    %v135 = vld [vmem:[%s1 + $0x160] sm:$0xf]
    %v136 = vld [vmem:[%s1 + $0x164] sm:$0xf]
    %v137 = vld [vmem:[%s1 + $0x168] sm:$0xf]
    %v138 = vld [vmem:[%s1 + $0x16c] sm:$0xf]
    %v139 = vld [vmem:[%s1 + $0x170] sm:$0xf]
    %v140 = vld [vmem:[%s1 + $0x174] sm:$0xf]
    %v141 = vld [vmem:[%s1 + $0x178] sm:$0xf]
    %v142 = vld [vmem:[%s1 + $0x17c] sm:$0xf]
    %v143 = vld [vmem:[%s1 + $0x180] sm:$0xf]
    %v144 = vld [vmem:[%s1 + $0x184] sm:$0xf]
    %v145 = vld [vmem:[%s1 + $0x188] sm:$0xf]
    %v146 = vld [vmem:[%s1 + $0x18c] sm:$0xf]
    %v147 = vld [vmem:[%s1 + $0x190] sm:$0xf]
    %v148 = vld [vmem:[%s1 + $0x194] sm:$0xf]
    %v149 = vld [vmem:[%s1 + $0x198] sm:$0xf]
    %v150 = vld [vmem:[%s1 + $0x19c] sm:$0xf]
    %v151 = vld [vmem:[%s1 + $0x1a0] sm:$0xf]
    %v152 = vld [vmem:[%s1 + $0x1a4] sm:$0xf]
    %v153 = vld [vmem:[%s1 + $0x1a8] sm:$0xf]
    %v154 = vld [vmem:[%s1 + $0x1ac] sm:$0xf]
    %v155 = vld [vmem:[%s1 + $0x1b0] sm:$0xf]
    %v156 = vld [vmem:[%s1 + $0x1b4] sm:$0xf]
    %v157 = vld [vmem:[%s1 + $0x1b8] sm:$0xf]
    %v158 = vld [vmem:[%s1 + $0x1bc] sm:$0xf]
    %v159 = vld [vmem:[%s1 + $0x1c0] sm:$0xf]
    %v160 = vld [vmem:[%s1 + $0x1c4] sm:$0xf]
    %v161 = vld [vmem:[%s1 + $0x1c8] sm:$0xf]
    %v162 = vld [vmem:[%s1 + $0x1cc] sm:$0xf]
    %v163 = vld [vmem:[%s1 + $0x1d0] sm:$0xf]
    %v164 = vld [vmem:[%s1 + $0x1d4] sm:$0xf]
    %v165 = vld [vmem:[%s1 + $0x1d8] sm:$0xf]
    %v166 = vld [vmem:[%s1 + $0x1dc] sm:$0xf]
    %v167 = vld [vmem:[%s1 + $0x1e0] sm:$0xf]
    %v168 = vld [vmem:[%s1 + $0x1e4] sm:$0xf]
    %v169 = vld [vmem:[%s1 + $0x1e8] sm:$0xf]
    %v170 = vld [vmem:[%s1 + $0x1ec] sm:$0xf]
    %v171 = vld [vmem:[%s1 + $0x1f0] sm:$0xf]
    %v172 = vld [vmem:[%s1 + $0x1f4] sm:$0xf]
    %v173 = vld [vmem:[%s1 + $0x1f8] sm:$0xf]
    %v174 = vld [vmem:[%s1 + $0x1fc] sm:$0xf]
    %v176 = vlaneseq
    %v177 = vshrl.u32 %v176, 7
    %v178 = vsub.s32 0, %v177
    %v179 = vrot.slane %v28, %v178
    %v309 = vunpack.c.l.b16 %v47
    %v310 = vunpack.c.l.b16 %v48
    %v311 = vunpack.c.l.b16 %v49
    %v312 = vunpack.c.l.b16 %v50
    %v313 = vunpack.c.l.b16 %v51
    %v314 = vunpack.c.l.b16 %v52
    %v315 = vunpack.c.l.b16 %v53
    %v316 = vunpack.c.l.b16 %v54
    %v317 = vunpack.c.l.b16 %v55
    %v318 = vunpack.c.l.b16 %v56
    %v319 = vunpack.c.l.b16 %v57
    %v320 = vunpack.c.l.b16 %v58
    %v321 = vunpack.c.l.b16 %v59
    %v322 = vunpack.c.l.b16 %v60
    %v323 = vunpack.c.l.b16 %v61
    %v324 = vunpack.c.l.b16 %v62
    %v325 = vunpack.c.l.b16 %v63
    %v326 = vunpack.c.l.b16 %v64
    %v327 = vunpack.c.l.b16 %v65
    %v328 = vunpack.c.l.b16 %v66
    %v329 = vunpack.c.l.b16 %v67
    %v330 = vunpack.c.l.b16 %v68
    %v331 = vunpack.c.l.b16 %v69
    %v332 = vunpack.c.l.b16 %v70
    %v333 = vunpack.c.l.b16 %v71
    %v334 = vunpack.c.l.b16 %v72
    %v335 = vunpack.c.l.b16 %v73
    %v336 = vunpack.c.l.b16 %v74
    %v337 = vunpack.c.l.b16 %v75
    %v338 = vunpack.c.l.b16 %v76
    %v339 = vunpack.c.l.b16 %v77
    %v340 = vunpack.c.l.b16 %v78
    %v341 = vunpack.c.l.b16 %v79
    %v342 = vunpack.c.l.b16 %v80
    %v343 = vunpack.c.l.b16 %v81
    %v344 = vunpack.c.l.b16 %v82
    %v345 = vunpack.c.l.b16 %v83
    %v346 = vunpack.c.l.b16 %v84
    %v347 = vunpack.c.l.b16 %v85
    %v348 = vunpack.c.l.b16 %v86
    %v349 = vunpack.c.l.b16 %v87
    %v350 = vunpack.c.l.b16 %v88
    %v351 = vunpack.c.l.b16 %v89
    %v352 = vunpack.c.l.b16 %v90
    %v353 = vunpack.c.l.b16 %v91
    %v354 = vunpack.c.l.b16 %v92
    %v355 = vunpack.c.l.b16 %v93
    %v356 = vunpack.c.l.b16 %v94
    %v357 = vunpack.c.l.b16 %v95
    %v358 = vunpack.c.l.b16 %v96
    %v359 = vunpack.c.l.b16 %v97
    %v360 = vunpack.c.l.b16 %v98
    %v361 = vunpack.c.l.b16 %v99
    %v362 = vunpack.c.l.b16 %v100
    %v363 = vunpack.c.l.b16 %v101
    %v364 = vunpack.c.l.b16 %v102
    %v365 = vunpack.c.l.b16 %v103
    %v366 = vunpack.c.l.b16 %v104
    %v367 = vunpack.c.l.b16 %v105
    %v368 = vunpack.c.l.b16 %v106
    %v369 = vunpack.c.l.b16 %v107
    %v370 = vunpack.c.l.b16 %v108
    %v371 = vunpack.c.l.b16 %v109
    %v372 = vunpack.c.l.b16 %v110
    %v373 = vunpack.c.l.b16 %v111
    %v374 = vunpack.c.l.b16 %v112
    %v375 = vunpack.c.l.b16 %v113
    %v376 = vunpack.c.l.b16 %v114
    %v377 = vunpack.c.l.b16 %v115
    %v378 = vunpack.c.l.b16 %v116
    %v379 = vunpack.c.l.b16 %v117
    %v380 = vunpack.c.l.b16 %v118
    %v381 = vunpack.c.l.b16 %v119
    %v382 = vunpack.c.l.b16 %v120
    %v383 = vunpack.c.l.b16 %v121
    %v384 = vunpack.c.l.b16 %v122
    %v385 = vunpack.c.l.b16 %v123
    %v386 = vunpack.c.l.b16 %v124
    %v387 = vunpack.c.l.b16 %v125
    %v388 = vunpack.c.l.b16 %v126
    %v389 = vunpack.c.l.b16 %v127
    %v390 = vunpack.c.l.b16 %v128
    %v391 = vunpack.c.l.b16 %v129
    %v392 = vunpack.c.l.b16 %v130
    %v393 = vunpack.c.l.b16 %v131
    %v394 = vunpack.c.l.b16 %v132
    %v395 = vunpack.c.l.b16 %v133
    %v396 = vunpack.c.l.b16 %v134
    %v397 = vunpack.c.l.b16 %v135
    %v398 = vunpack.c.l.b16 %v136
    %v399 = vunpack.c.l.b16 %v137
    %v400 = vunpack.c.l.b16 %v138
    %v401 = vunpack.c.l.b16 %v139
    %v402 = vunpack.c.l.b16 %v140
    %v403 = vunpack.c.l.b16 %v141
    %v404 = vunpack.c.l.b16 %v142
    %v405 = vunpack.c.l.b16 %v143
    %v406 = vunpack.c.l.b16 %v144
    %v407 = vunpack.c.l.b16 %v145
    %v408 = vunpack.c.l.b16 %v146
    %v409 = vunpack.c.l.b16 %v147
    %v410 = vunpack.c.l.b16 %v148
    %v411 = vunpack.c.l.b16 %v149
    %v412 = vunpack.c.l.b16 %v150
    %v413 = vunpack.c.l.b16 %v151
    %v414 = vunpack.c.l.b16 %v152
    %v415 = vunpack.c.l.b16 %v153
    %v416 = vunpack.c.l.b16 %v154
    %v417 = vunpack.c.l.b16 %v155
    %v418 = vunpack.c.l.b16 %v156
    %v419 = vunpack.c.l.b16 %v157
    %v420 = vunpack.c.l.b16 %v158
    %v421 = vunpack.c.l.b16 %v159
    %v422 = vunpack.c.l.b16 %v160
    %v423 = vunpack.c.l.b16 %v161
    %v424 = vunpack.c.l.b16 %v162
    %v425 = vunpack.c.l.b16 %v163
    %v426 = vunpack.c.l.b16 %v164
    %v427 = vunpack.c.l.b16 %v165
    %v428 = vunpack.c.l.b16 %v166
    %v429 = vunpack.c.l.b16 %v167
    %v430 = vunpack.c.l.b16 %v168
    %v431 = vunpack.c.l.b16 %v169
    %v432 = vunpack.c.l.b16 %v170
    %v433 = vunpack.c.l.b16 %v171
    %v434 = vunpack.c.l.b16 %v172
    %v435 = vunpack.c.l.b16 %v173
    %v436 = vunpack.c.l.b16 %v174
    %v437 = vpack.c.b16 %v310, %v309
    %v438 = vpack.c.b16 %v312, %v311
    %v439 = vpack.c.b16 %v314, %v313
    %v440 = vpack.c.b16 %v316, %v315
    %v441 = vpack.c.b16 %v318, %v317
    %v442 = vpack.c.b16 %v320, %v319
    %v443 = vpack.c.b16 %v322, %v321
    %v444 = vpack.c.b16 %v324, %v323
    %v445 = vpack.c.b16 %v326, %v325
    %v446 = vpack.c.b16 %v328, %v327
    %v447 = vpack.c.b16 %v330, %v329
    %v448 = vpack.c.b16 %v332, %v331
    %v449 = vpack.c.b16 %v334, %v333
    %v450 = vpack.c.b16 %v336, %v335
    %v451 = vpack.c.b16 %v338, %v337
    %v452 = vpack.c.b16 %v340, %v339
    %v453 = vpack.c.b16 %v342, %v341
    %v454 = vpack.c.b16 %v344, %v343
    %v455 = vpack.c.b16 %v346, %v345
    %v456 = vpack.c.b16 %v348, %v347
    %v457 = vpack.c.b16 %v350, %v349
    %v458 = vpack.c.b16 %v352, %v351
    %v459 = vpack.c.b16 %v354, %v353
    %v460 = vpack.c.b16 %v356, %v355
    %v461 = vpack.c.b16 %v358, %v357
    %v462 = vpack.c.b16 %v360, %v359
    %v463 = vpack.c.b16 %v362, %v361
    %v464 = vpack.c.b16 %v364, %v363
    %v465 = vpack.c.b16 %v366, %v365
    %v466 = vpack.c.b16 %v368, %v367
    %v467 = vpack.c.b16 %v370, %v369
    %v468 = vpack.c.b16 %v372, %v371
    %v469 = vpack.c.b16 %v374, %v373
    %v470 = vpack.c.b16 %v376, %v375
    %v471 = vpack.c.b16 %v378, %v377
    %v472 = vpack.c.b16 %v380, %v379
    %v473 = vpack.c.b16 %v382, %v381
    %v474 = vpack.c.b16 %v384, %v383
    %v475 = vpack.c.b16 %v386, %v385
    %v476 = vpack.c.b16 %v388, %v387
    %v477 = vpack.c.b16 %v390, %v389
    %v478 = vpack.c.b16 %v392, %v391
    %v479 = vpack.c.b16 %v394, %v393
    %v480 = vpack.c.b16 %v396, %v395
    %v481 = vpack.c.b16 %v398, %v397
    %v482 = vpack.c.b16 %v400, %v399
    %v483 = vpack.c.b16 %v402, %v401
    %v484 = vpack.c.b16 %v404, %v403
    %v485 = vpack.c.b16 %v406, %v405
    %v486 = vpack.c.b16 %v408, %v407
    %v487 = vpack.c.b16 %v410, %v409
    %v488 = vpack.c.b16 %v412, %v411
    %v489 = vpack.c.b16 %v414, %v413
    %v490 = vpack.c.b16 %v416, %v415
    %v491 = vpack.c.b16 %v418, %v417
    %v492 = vpack.c.b16 %v420, %v419
    %v493 = vpack.c.b16 %v422, %v421
    %v494 = vpack.c.b16 %v424, %v423
    %v495 = vpack.c.b16 %v426, %v425
    %v496 = vpack.c.b16 %v428, %v427
    %v497 = vpack.c.b16 %v430, %v429
    %v498 = vpack.c.b16 %v432, %v431
    %v499 = vpack.c.b16 %v434, %v433
    %v500 = vpack.c.b16 %v436, %v435
    %565 = vmatprep.subr.bf16.mxu0 0
    %566 = vmatpush1.bf16.msra.mxu0 %v444
    %567 = vmatprep.subr.bf16.mxu0 0
    %568 = vmatpush1.bf16.msra.mxu0 %v443
    %569 = vmatprep.subr.bf16.mxu0 0
    %570 = vmatpush1.bf16.msra.mxu0 %v442
    %571 = vmatprep.subr.bf16.mxu0 0
    %572 = vmatpush1.bf16.msra.mxu0 %v441
    %573 = vmatprep.subr.bf16.mxu0 0
    %574 = vmatpush1.bf16.msra.mxu0 %v440
    %575 = vmatprep.subr.bf16.mxu0 0
    %576 = vmatpush1.bf16.msra.mxu0 %v439
    %577 = vmatprep.subr.bf16.mxu0 0
    %578 = vmatpush1.bf16.msra.mxu0 %v438
    %579 = vmatprep.subr.bf16.mxu0 0
    %580 = vmatpush1.bf16.msra.mxu0 %v437
    %581 = vmatprep.subr.bf16.mxu0 0
    %582 = vmatpush2.bf16.msra.mxu0 %v452
    %583 = vmatprep.subr.bf16.mxu0 0
    %584 = vmatpush2.bf16.msra.mxu0 %v451
    %585 = vmatprep.subr.bf16.mxu0 0
    %586 = vmatpush2.bf16.msra.mxu0 %v450
    %587 = vmatprep.subr.bf16.mxu0 0
    %588 = vmatpush2.bf16.msra.mxu0 %v449
    %589 = vmatprep.subr.bf16.mxu0 0
    %590 = vmatpush2.bf16.msra.mxu0 %v448
    %591 = vmatprep.subr.bf16.mxu0 0
    %592 = vmatpush2.bf16.msra.mxu0 %v447
    %593 = vmatprep.subr.bf16.mxu0 0
    %594 = vmatpush2.bf16.msra.mxu0 %v446
    %595 = vmatprep.subr.bf16.mxu0 0
    %596 = vmatpush2.bf16.msra.mxu0 %v445
    %597 = vmatprep.mubr.bf16.mxu0 %v40
    %598 = vmatmul.mubr.bf16.gmra.mxu0 %v39
    %v599 = vpop.f32.mrf.mxu0
    %v600 = vadd.f32 %v179, %v599
    %v601 = vpop.f32.mrf.mxu0
    %v602 = vpop.f32.mrf.mxu0
    %v603 = vpop.f32.mrf.mxu0
    %604 = vdwg.mxu0
    %605 = vmatprep.subr.bf16.mxu0 0
    %606 = vmatpush1.bf16.msra.mxu0 %v460
    %607 = vmatprep.subr.bf16.mxu0 0
    %608 = vmatpush1.bf16.msra.mxu0 %v459
    %609 = vmatprep.subr.bf16.mxu0 0
    %610 = vmatpush1.bf16.msra.mxu0 %v458
    %611 = vmatprep.subr.bf16.mxu0 0
    %612 = vmatpush1.bf16.msra.mxu0 %v457
    %613 = vmatprep.subr.bf16.mxu0 0
    %614 = vmatpush1.bf16.msra.mxu0 %v456
    %615 = vmatprep.subr.bf16.mxu0 0
    %616 = vmatpush1.bf16.msra.mxu0 %v455
    %617 = vmatprep.subr.bf16.mxu0 0
    %618 = vmatpush1.bf16.msra.mxu0 %v454
    %619 = vmatprep.subr.bf16.mxu0 0
    %620 = vmatpush1.bf16.msra.mxu0 %v453
    %621 = vmatprep.subr.bf16.mxu0 0
    %622 = vmatpush2.bf16.msra.mxu0 %v468
    %623 = vmatprep.subr.bf16.mxu0 0
    %624 = vmatpush2.bf16.msra.mxu0 %v467
    %625 = vmatprep.subr.bf16.mxu0 0
    %626 = vmatpush2.bf16.msra.mxu0 %v466
    %627 = vmatprep.subr.bf16.mxu0 0
    %628 = vmatpush2.bf16.msra.mxu0 %v465
    %629 = vmatprep.subr.bf16.mxu0 0
    %630 = vmatpush2.bf16.msra.mxu0 %v464
    %631 = vmatprep.subr.bf16.mxu0 0
    %632 = vmatpush2.bf16.msra.mxu0 %v463
    %633 = vmatprep.subr.bf16.mxu0 0
    %634 = vmatpush2.bf16.msra.mxu0 %v462
    %635 = vmatprep.subr.bf16.mxu0 0
    %636 = vmatpush2.bf16.msra.mxu0 %v461
    %637 = vmatprep.mubr.bf16.mxu0 %v42
    %638 = vmatmul.mubr.bf16.gmra.mxu0 %v41
    %v639 = vpop.f32.mrf.mxu0
    %v640 = vadd.f32 %v600, %v639
    %v641 = vpop.f32.mrf.mxu0
    %v642 = vpop.f32.mrf.mxu0
    %v643 = vpop.f32.mrf.mxu0
    %644 = vdwg.mxu0
    %645 = vmatprep.subr.bf16.mxu0 0
    %646 = vmatpush1.bf16.msra.mxu0 %v476
    %647 = vmatprep.subr.bf16.mxu0 0
    %648 = vmatpush1.bf16.msra.mxu0 %v475
    %649 = vmatprep.subr.bf16.mxu0 0
    %650 = vmatpush1.bf16.msra.mxu0 %v474
    %651 = vmatprep.subr.bf16.mxu0 0
    %652 = vmatpush1.bf16.msra.mxu0 %v473
    %653 = vmatprep.subr.bf16.mxu0 0
    %654 = vmatpush1.bf16.msra.mxu0 %v472
    %655 = vmatprep.subr.bf16.mxu0 0
    %656 = vmatpush1.bf16.msra.mxu0 %v471
    %657 = vmatprep.subr.bf16.mxu0 0
    %658 = vmatpush1.bf16.msra.mxu0 %v470
    %659 = vmatprep.subr.bf16.mxu0 0
    %660 = vmatpush1.bf16.msra.mxu0 %v469
    %661 = vmatprep.subr.bf16.mxu0 0
    %662 = vmatpush2.bf16.msra.mxu0 %v484
    %663 = vmatprep.subr.bf16.mxu0 0
    %664 = vmatpush2.bf16.msra.mxu0 %v483
    %665 = vmatprep.subr.bf16.mxu0 0
    %666 = vmatpush2.bf16.msra.mxu0 %v482
    %667 = vmatprep.subr.bf16.mxu0 0
    %668 = vmatpush2.bf16.msra.mxu0 %v481
    %669 = vmatprep.subr.bf16.mxu0 0
    %670 = vmatpush2.bf16.msra.mxu0 %v480
    %671 = vmatprep.subr.bf16.mxu0 0
    %672 = vmatpush2.bf16.msra.mxu0 %v479
    %673 = vmatprep.subr.bf16.mxu0 0
    %674 = vmatpush2.bf16.msra.mxu0 %v478
    %675 = vmatprep.subr.bf16.mxu0 0
    %676 = vmatpush2.bf16.msra.mxu0 %v477
    %677 = vmatprep.mubr.bf16.mxu0 %v44
    %678 = vmatmul.mubr.bf16.gmra.mxu0 %v43
    %v679 = vpop.f32.mrf.mxu0
    %v680 = vadd.f32 %v640, %v679
    %v681 = vpop.f32.mrf.mxu0
    %v682 = vpop.f32.mrf.mxu0
    %v683 = vpop.f32.mrf.mxu0
    %684 = vdwg.mxu0
    %685 = vmatprep.subr.bf16.mxu0 0
    %686 = vmatpush1.bf16.msra.mxu0 %v492
    %687 = vmatprep.subr.bf16.mxu0 0
    %688 = vmatpush1.bf16.msra.mxu0 %v491
    %689 = vmatprep.subr.bf16.mxu0 0
    %690 = vmatpush1.bf16.msra.mxu0 %v490
    %691 = vmatprep.subr.bf16.mxu0 0
    %692 = vmatpush1.bf16.msra.mxu0 %v489
    %693 = vmatprep.subr.bf16.mxu0 0
    %694 = vmatpush1.bf16.msra.mxu0 %v488
    %695 = vmatprep.subr.bf16.mxu0 0
    %696 = vmatpush1.bf16.msra.mxu0 %v487
    %697 = vmatprep.subr.bf16.mxu0 0
    %698 = vmatpush1.bf16.msra.mxu0 %v486
    %699 = vmatprep.subr.bf16.mxu0 0
    %700 = vmatpush1.bf16.msra.mxu0 %v485
    %701 = vmatprep.subr.bf16.mxu0 0
    %702 = vmatpush2.bf16.msra.mxu0 %v500
    %703 = vmatprep.subr.bf16.mxu0 0
    %704 = vmatpush2.bf16.msra.mxu0 %v499
    %705 = vmatprep.subr.bf16.mxu0 0
    %706 = vmatpush2.bf16.msra.mxu0 %v498
    %707 = vmatprep.subr.bf16.mxu0 0
    %708 = vmatpush2.bf16.msra.mxu0 %v497
    %709 = vmatprep.subr.bf16.mxu0 0
    %710 = vmatpush2.bf16.msra.mxu0 %v496
    %711 = vmatprep.subr.bf16.mxu0 0
    %712 = vmatpush2.bf16.msra.mxu0 %v495
    %713 = vmatprep.subr.bf16.mxu0 0
    %714 = vmatpush2.bf16.msra.mxu0 %v494
    %715 = vmatprep.subr.bf16.mxu0 0
    %716 = vmatpush2.bf16.msra.mxu0 %v493
    %717 = vmatprep.mubr.bf16.mxu0 %v46
    %718 = vmatmul.mubr.bf16.gmra.mxu0 %v45
    %v719 = vpop.f32.mrf.mxu0
    %v720 = vadd.f32 %v680, %v719
    %v721 = vpop.f32.mrf.mxu0
    %v722 = vpop.f32.mrf.mxu0
    %v723 = vpop.f32.mrf.mxu0
    %724 = vdwg.mxu0
    %v725 = vmax.f32 %v720, 0.0
    %v726 = vpack.c.bf16 %v725, %v725
    %v727 = vld [vmem:[%s3] sm:$0xf]
    %v728 = vld [vmem:[%s3 + $0x4] sm:$0xf]
    %v729 = vld [vmem:[%s3 + $0x8] sm:$0xf]
    %v730 = vld [vmem:[%s3 + $0xc] sm:$0xf]
    %v731 = vld [vmem:[%s3 + $0x10] sm:$0xf]
    %v732 = vld [vmem:[%s3 + $0x14] sm:$0xf]
    %v733 = vld [vmem:[%s3 + $0x18] sm:$0xf]
    %v734 = vld [vmem:[%s3 + $0x1c] sm:$0xf]
    %v736 = vlaneseq
    %v737 = vshrl.u32 %v736, 7
    %v738 = vsub.s32 0, %v737
    %v739 = vrot.slane %v29, %v738
    %v749 = vunpack.c.l.b16 %v727
    %v750 = vunpack.c.l.b16 %v728
    %v751 = vunpack.c.l.b16 %v729
    %v752 = vunpack.c.l.b16 %v730
    %v753 = vunpack.c.l.b16 %v731
    %v754 = vunpack.c.l.b16 %v732
    %v755 = vunpack.c.l.b16 %v733
    %v756 = vunpack.c.l.b16 %v734
    %v757 = vpack.c.b16 %v750, %v749
    %v758 = vpack.c.b16 %v752, %v751
    %v759 = vpack.c.b16 %v754, %v753
    %v760 = vpack.c.b16 %v756, %v755
    %vm765 = vcmask 523264
    %v767 = vsel %vm765, %v726, 0
    %769 = vmatprep.subr.bf16.mxu0 0
    %770 = vmatpush1.bf16.msra.mxu0 0
    %771 = vmatprep.subr.bf16.mxu0 0
    %772 = vmatpush1.bf16.msra.mxu0 0
    %773 = vmatprep.subr.bf16.mxu0 0
    %774 = vmatpush1.bf16.msra.mxu0 0
    %775 = vmatprep.subr.bf16.mxu0 0
    %776 = vmatpush1.bf16.msra.mxu0 0
    %777 = vmatprep.subr.bf16.mxu0 0
    %778 = vmatpush1.bf16.msra.mxu0 %v760
    %779 = vmatprep.subr.bf16.mxu0 0
    %780 = vmatpush1.bf16.msra.mxu0 %v759
    %781 = vmatprep.subr.bf16.mxu0 0
    %782 = vmatpush1.bf16.msra.mxu0 %v758
    %783 = vmatprep.subr.bf16.mxu0 0
    %784 = vmatpush1.bf16.msra.mxu0 %v757
    %785 = vmatprep.subr.bf16.mxu0 0
    %786 = vmatpush2.bf16.msra.mxu0 0
    %787 = vmatprep.subr.bf16.mxu0 0
    %788 = vmatpush2.bf16.msra.mxu0 0
    %789 = vmatprep.subr.bf16.mxu0 0
    %790 = vmatpush2.bf16.msra.mxu0 0
    %791 = vmatprep.subr.bf16.mxu0 0
    %792 = vmatpush2.bf16.msra.mxu0 0
    %793 = vmatprep.subr.bf16.mxu0 0
    %794 = vmatpush2.bf16.msra.mxu0 0
    %795 = vmatprep.subr.bf16.mxu0 0
    %796 = vmatpush2.bf16.msra.mxu0 0
    %797 = vmatprep.subr.bf16.mxu0 0
    %798 = vmatpush2.bf16.msra.mxu0 0
    %799 = vmatprep.subr.bf16.mxu0 0
    %800 = vmatpush2.bf16.msra.mxu0 0
    %801 = vmatprep.mubr.bf16.mxu0 0
    %802 = vmatmul.mubr.bf16.gmra.mxu0 %v767
    %v803 = vpop.f32.mrf.mxu0
    %v804 = vadd.f32 %v739, %v803
    %v805 = vpop.f32.mrf.mxu0
    %v806 = vpop.f32.mrf.mxu0
    %v807 = vpop.f32.mrf.mxu0
    %808 = vdwg.mxu0
    %v809 = vmax.f32 %v804, 0.0
    %v810 = vpack.c.bf16 %v809, %v809
    %v811 = vld [vmem:[%s5] sm:$0xf]
    %v812 = vld [vmem:[%s5 + $0x4] sm:$0xf]
    %v813 = vld [vmem:[%s5 + $0x8] sm:$0xf]
    %v814 = vld [vmem:[%s5 + $0xc] sm:$0xf]
    %v815 = vld [vmem:[%s5 + $0x10] sm:$0xf]
    %v816 = vld [vmem:[%s5 + $0x14] sm:$0xf]
    %v817 = vld [vmem:[%s5 + $0x18] sm:$0xf]
    %v818 = vld [vmem:[%s5 + $0x1c] sm:$0xf]
    %v820 = vlaneseq
    %v821 = vshrl.u32 %v820, 7
    %v822 = vsub.s32 0, %v821
    %v823 = vrot.slane %v30, %v822
    %v833 = vunpack.c.l.b16 %v811
    %v834 = vunpack.c.l.b16 %v812
    %v835 = vunpack.c.l.b16 %v813
    %v836 = vunpack.c.l.b16 %v814
    %v837 = vunpack.c.l.b16 %v815
    %v838 = vunpack.c.l.b16 %v816
    %v839 = vunpack.c.l.b16 %v817
    %v840 = vunpack.c.l.b16 %v818
    %v841 = vpack.c.b16 %v834, %v833
    %v842 = vpack.c.b16 %v836, %v835
    %v843 = vpack.c.b16 %v838, %v837
    %v844 = vpack.c.b16 %v840, %v839
    %v850 = vsel %vm765, %v810, 0
    %852 = vmatprep.subr.bf16.mxu0 0
    %853 = vmatpush1.bf16.msra.mxu0 0
    %854 = vmatprep.subr.bf16.mxu0 0
    %855 = vmatpush1.bf16.msra.mxu0 0
    %856 = vmatprep.subr.bf16.mxu0 0
    %857 = vmatpush1.bf16.msra.mxu0 0
    %858 = vmatprep.subr.bf16.mxu0 0
    %859 = vmatpush1.bf16.msra.mxu0 0
    %860 = vmatprep.subr.bf16.mxu0 0
    %861 = vmatpush1.bf16.msra.mxu0 %v844
    %862 = vmatprep.subr.bf16.mxu0 0
    %863 = vmatpush1.bf16.msra.mxu0 %v843
    %864 = vmatprep.subr.bf16.mxu0 0
    %865 = vmatpush1.bf16.msra.mxu0 %v842
    %866 = vmatprep.subr.bf16.mxu0 0
    %867 = vmatpush1.bf16.msra.mxu0 %v841
    %868 = vmatprep.subr.bf16.mxu0 0
    %869 = vmatpush2.bf16.msra.mxu0 0
    %870 = vmatprep.subr.bf16.mxu0 0
    %871 = vmatpush2.bf16.msra.mxu0 0
    %872 = vmatprep.subr.bf16.mxu0 0
    %873 = vmatpush2.bf16.msra.mxu0 0
    %874 = vmatprep.subr.bf16.mxu0 0
    %875 = vmatpush2.bf16.msra.mxu0 0
    %876 = vmatprep.subr.bf16.mxu0 0
    %877 = vmatpush2.bf16.msra.mxu0 0
    %878 = vmatprep.subr.bf16.mxu0 0
    %879 = vmatpush2.bf16.msra.mxu0 0
    %880 = vmatprep.subr.bf16.mxu0 0
    %881 = vmatpush2.bf16.msra.mxu0 0
    %882 = vmatprep.subr.bf16.mxu0 0
    %883 = vmatpush2.bf16.msra.mxu0 0
    %884 = vmatprep.mubr.bf16.mxu0 0
    %885 = vmatmul.mubr.bf16.gmra.mxu0 %v850
    %v886 = vpop.f32.mrf.mxu0
    %v887 = vadd.f32 %v823, %v886
    %v888 = vpop.f32.mrf.mxu0
    %v889 = vpop.f32.mrf.mxu0
    %v890 = vpop.f32.mrf.mxu0
    %891 = vdwg.mxu0
    %892 = vst [vmem:[#allocation2] sm:$0xff] %v887
    // Predicated region
    $region30: #{tpu_custom_call.1} parent=1 // pred_check
      _
    $region31: #{tpu_custom_call.1} parent=1 // pred_check_branch
      %894 = sbr.rel (0) target = $region33
    $region32: #{tpu_custom_call.1} parent=1 // pred_region
      %s896 = ssub.s32 128, 128
      %897 = vsyncadd [#allocation3], %s896
      %s899 = sshll.u32 [#allocation2], 4
      %s900 = int_to_ptr.vmem [resolvable:$true] %s899
      %902 = dma.vmem_to_hbm [thread:$0]  %s900, 128, %s7, [#allocation3]
    $region33: #{tpu_custom_call.1} parent=1 // pred_fallthru
      _
    // Predicated region
    $region34: #{tpu_custom_call.1} parent=1 // pred_check
      _
    $region35: #{tpu_custom_call.1} parent=1 // pred_check_branch
      %904 = sbr.rel (0) target = $region37
    $region36: #{tpu_custom_call.1} parent=1 // pred_region
      %905 = dma.done [#allocation3], 128
    $region37: #{tpu_custom_call.1} parent=1 // pred_fallthru
      _
    %906 = vsyncpa [#allocation3], 1

</llo_original>
